<compile_context>
chip_gen: v6e
topology: v6e:2x2x1
jax: 0.10.0
libtpu: 0.0.40
codegen_flags: <defaults>
</compile_context>

<pallas_src>
import functools
import math

import jax
import jax.numpy as jnp
from jax import lax
from jax.experimental import pallas as pl
from jax.experimental.pallas import tpu as pltpu

BN_EPS = 1e-5
LEAKY_SLOPE = 0.1


# ----------------------------- Pallas kernel ------------------------------- #
def _make_rnn_kernel(V, B, L, K):
    """Kernel running K sequential RNN steps per grid iteration."""
    C = 2 * V          # conv channels (2 * val_dim)
    M = B * L          # lane dimension (batch * length)
    INV_M = 1.0 / M

    def kernel(val_ref, w_ref, gb_ref, mask_ref, out_ref, hid_ref):
        # _reinitialize(): zero the recurrent state before the first step.  hid_ref is a
        # VMEM-resident output block (constant block index), so it carries state across
        # grid iterations without touching HBM.
        @pl.when(pl.program_id(0) == 0)
        def _():
            hid_ref[...] = jnp.zeros_like(hid_ref)

        w = w_ref[...]                       # (3C, C): [W_tap0; W_tap1; W_tap2]
        g = gb_ref[:, 0:1]                   # (C, 1) BN gamma
        be = gb_ref[:, 1:2]                  # (C, 1) BN beta
        m_prev = mask_ref[0:1, :]            # (1, M) kills x_{l-1} at seq/batch edges
        m_next = mask_ref[1:2, :]            # (1, M) kills x_{l+1} at seq/batch edges

        h = hid_ref[...]                     # (V, M) recurrent state

        for k in range(K):                   # static unroll of K timesteps
            # torch.concatenate((hidden_state, value), dim=1) -> channel axis 0 here.
            total = jnp.concatenate([h, val_ref[k]], axis=0)             # (C, M)

            # Conv1d(k=3, stride=1, 'same'):  z = W0 @ x_{l-1} + W1 @ x_l + W2 @ x_{l+1}.
            # One MXU dot (DEFAULT precision, f32 accumulate) + two masked XLU lane-rolls
            # of the result; rolling after the dot is exact because the roll/mask are
            # column-wise and commute with the left matmul.
            u = jnp.dot(w, total, preferred_element_type=jnp.float32)    # (3C, M)
            z = (u[C:2 * C]
                 + pltpu.roll(u[:C], 1, axis=1) * m_prev
                 + pltpu.roll(u[2 * C:], M - 1, axis=1) * m_next)        # (C, M)
            # (conv bias omitted: it cancels exactly under training-mode BatchNorm)

            # BatchNorm1d training-mode batch stats over (B, L) (= lane axis), biased
            # variance, computed single-pass; affine folded to per-channel scale/shift.
            s1 = jnp.sum(z, axis=1, keepdims=True)
            s2 = jnp.sum(z * z, axis=1, keepdims=True)
            mean = s1 * INV_M
            var = jnp.maximum(s2 * INV_M - mean * mean, 0.0)
            scale = g * lax.rsqrt(var + BN_EPS)                          # (C, 1)
            shift = be - mean * scale                                    # (C, 1)
            y = z * scale + shift
            y = jnp.maximum(y, LEAKY_SLOPE * y)                          # LeakyReLU(0.1)

            h = y[:V, :]                    # self.hidden_state = out_rnn[:, :val_dim, :]
            out_ref[k] = y[V:, :]           # return             out_rnn[:, val_dim:, :]

        hid_ref[...] = h                    # carry state to the next grid iteration

    return kernel


# ------------------------------ wrapper ------------------------------------ #
@functools.partial(jax.jit, static_argnames=("unroll",))
def rnn_forward_pallas(values_tbvl, conv_w, conv_b, bn_gamma, bn_beta, *, unroll=2):
    """Run T sequential RNN.forward steps in a single fused pallas_call.

    values_tbvl : (T, B, V, L) float32 -- sequence of `value` inputs (torch NCL layout).
    conv_w      : (2V, 2V, 3)  torch Conv1d weight (out, in, k); conv_b/bn_*: (2V,).
    Returns (outputs (T, B, V, L), final_hidden (B, V, L)).
    """
    del conv_b  # cancels exactly under training-mode BatchNorm (mean removes it)
    T, B, V, L = values_tbvl.shape
    C, M = 2 * V, B * L
    K = unroll if T % unroll == 0 else 1

    # Layout plumbing: channels on sublanes, B*L on lanes (lane-dense output slab).
    vals = jnp.transpose(values_tbvl, (0, 2, 1, 3)).reshape(T, V, M)     # (T, V, M)

    # Stacked conv taps: tap k multiplies x_{l+k-1}.
    w_stk = jnp.concatenate(
        [conv_w[:, :, 0], conv_w[:, :, 1], conv_w[:, :, 2]], axis=0)      # (3C, C)
    gb = jnp.stack([bn_gamma, bn_beta], axis=1).astype(jnp.float32)       # (C, 2)

    # Precomputed boundary masks (grid-invariant): lane m = n*L + l.
    lane = jnp.arange(M, dtype=jnp.int32) % L
    masks = jnp.stack([lane != 0, lane != L - 1], axis=0).astype(jnp.float32)  # (2, M)

    out_flat, hid_flat = pl.pallas_call(
        _make_rnn_kernel(V, B, L, K),
        grid=(T // K,),
        in_specs=[
            pl.BlockSpec((K, V, M), lambda t: (t, 0, 0)),      # K values per grid step
            pl.BlockSpec((3 * C, C), lambda t: (0, 0)),        # stacked conv weight
            pl.BlockSpec((C, 2), lambda t: (0, 0)),            # BN gamma/beta
            pl.BlockSpec((2, M), lambda t: (0, 0)),            # boundary masks
        ],
        out_specs=[
            pl.BlockSpec((K, V, M), lambda t: (t, 0, 0)),      # per-step outputs
            pl.BlockSpec((V, M), lambda t: (0, 0)),            # hidden state (resident)
        ],
        out_shape=(jax.ShapeDtypeStruct((T, V, M), jnp.float32),
                   jax.ShapeDtypeStruct((V, M), jnp.float32)),
        compiler_params=pltpu.CompilerParams(
            dimension_semantics=("arbitrary",)),               # recurrent -> sequential
    )(vals, w_stk, gb, masks)

    outs = jnp.transpose(out_flat.reshape(T, V, B, L), (0, 2, 1, 3))     # (T, B, V, L)
    hidden = jnp.transpose(hid_flat.reshape(V, B, L), (1, 0, 2))         # (B, V, L)
    return outs, hidden


# ------------------------- pure-JAX reference (NCL) ------------------------- #
def rnn_forward_ref(values_tbvl, conv_w, conv_b, bn_gamma, bn_beta):
    T, B, V, L = values_tbvl.shape
    hidden = jnp.zeros((B, V, L), jnp.float32)
    outs = []
    for t in range(T):
        total = jnp.concatenate([hidden, values_tbvl[t]], axis=1)        # (B, 2V, L)
        z = lax.conv_general_dilated(
            total, conv_w, window_strides=(1,), padding="SAME",
            dimension_numbers=("NCH", "OIH", "NCH"),
            precision=lax.Precision.HIGHEST)
        z = z + conv_b[None, :, None]
        mean = jnp.mean(z, axis=(0, 2), keepdims=True)
        var = jnp.mean((z - mean) ** 2, axis=(0, 2), keepdims=True)
        y = (z - mean) * lax.rsqrt(var + BN_EPS) * bn_gamma[None, :, None] \
            + bn_beta[None, :, None]
        y = jnp.where(y >= 0, y, LEAKY_SLOPE * y)
        hidden = y[:, :V, :]
        outs.append(y[:, V:, :])
    return jnp.stack(outs), hidden


# ---------------------------------- main ------------------------------------ #
if __name__ == "__main__":
    # RNN(val_dim=16, batch_size=2), seq_length=64, driven for T=4 steps.
    V, B, L, T = 16, 2, 64, 4
    C = 2 * V

    key = jax.random.PRNGKey(0)
    kv, kw, kb, kg, kbe = jax.random.split(key, 5)

    values = jax.random.normal(kv, (T, B, V, L), jnp.float32)
    conv_w = jax.random.normal(kw, (C, C, 3), jnp.float32) / math.sqrt(C * 3)
    conv_b = 0.1 * jax.random.normal(kb, (C,), jnp.float32)
    bn_gamma = 1.0 + 0.1 * jax.random.normal(kg, (C,), jnp.float32)
    bn_beta = 0.1 * jax.random.normal(kbe, (C,), jnp.float32)

    outs_p, hid_p = rnn_forward_pallas(values, conv_w, conv_b, bn_gamma, bn_beta)
    outs_p, hid_p = jax.block_until_ready((outs_p, hid_p))

    outs_r, hid_r = rnn_forward_ref(values, conv_w, conv_b, bn_gamma, bn_beta)

    # Tolerance accounts for DEFAULT (single-pass bf16) MXU precision in the kernel vs
    # the HIGHEST-precision reference, compounded over T recurrent steps.  Structural
    # bugs (wrong tap / mask / BN) would show errors of O(0.1-1).
    err_o = float(jnp.max(jnp.abs(outs_p - outs_r)))
    err_h = float(jnp.max(jnp.abs(hid_p - hid_r)))
    ok = bool(jnp.allclose(outs_p, outs_r, atol=5e-2, rtol=5e-2)) and \
         bool(jnp.allclose(hid_p, hid_r, atol=5e-2, rtol=5e-2))
    if not ok:
        raise AssertionError(f"mismatch: max out err={err_o}, max hidden err={err_h}")

    print("KERNEL_OK")
</pallas_src>

<mosaic_0001>
module attributes {stable_mosaic.version = 11 : i64} {
  func.func @kernel(%arg0: i32, %arg1: memref<2x16x128xf32, #tpu.memory_space<vmem>>, %arg2: memref<96x32xf32, #tpu.memory_space<vmem>>, %arg3: memref<32x2xf32, #tpu.memory_space<vmem>>, %arg4: memref<2x128xf32, #tpu.memory_space<vmem>>, %arg5: memref<2x16x128xf32, #tpu.memory_space<vmem>>, %arg6: memref<16x128xf32, #tpu.memory_space<vmem>>) attributes {dimension_semantics = [#tpu.dimension_semantics<arbitrary>], iteration_bounds = array<i64: 2>, scalar_prefetch = 0 : i64, scratch_operands = 0 : i64, tpu.core_type = #tpu.core_type<tc>, window_params = [{transform_indices = @transform_0, window_bounds = array<i64: 2, 16, 128>}, {pipeline_mode = #tpu.pipeline_mode<synchronous>, transform_indices = @transform_1, window_bounds = array<i64: 96, 32>}, {pipeline_mode = #tpu.pipeline_mode<synchronous>, transform_indices = @transform_2, window_bounds = array<i64: 32, 2>}, {pipeline_mode = #tpu.pipeline_mode<synchronous>, transform_indices = @transform_3, window_bounds = array<i64: 2, 128>}, {transform_indices = @transform_4, window_bounds = array<i64: 2, 16, 128>}, {pipeline_mode = #tpu.pipeline_mode<synchronous>, transform_indices = @transform_5, window_bounds = array<i64: 16, 128>}]} {
    %c0_i32 = arith.constant 0 : i32
    %0 = arith.cmpi eq, %arg0, %c0_i32 : i32
    %1 = arith.extui %0 : i1 to i32
    %c0_i32_0 = arith.constant 0 : i32
    %2 = arith.cmpi ne, %1, %c0_i32_0 : i32
    scf.if %2 {
      %cst_42 = arith.constant 0.000000e+00 : f32
      %102 = vector.broadcast %cst_42 : f32 to vector<16x128xf32>
      %c0_43 = arith.constant 0 : index
      %c0_44 = arith.constant 0 : index
      %103 = vector.load %arg6[%c0_43, %c0_44] : memref<16x128xf32, #tpu.memory_space<vmem>>, vector<16x128xf32>
      tpu.vector_store %arg6[%c0_43, %c0_44], %102 {strides = array<i32>} : memref<16x128xf32, #tpu.memory_space<vmem>>, vector<16x128xf32>,
    } else {
    }
    %c0 = arith.constant 0 : index
    %c0_1 = arith.constant 0 : index
    %3 = vector.load %arg2[%c0, %c0_1] : memref<96x32xf32, #tpu.memory_space<vmem>>, vector<96x32xf32>
    %c0_2 = arith.constant 0 : index
    %c0_3 = arith.constant 0 : index
    %4 = vector.load %arg3[%c0_2, %c0_3] : memref<32x2xf32, #tpu.memory_space<vmem>>, vector<32x1xf32>
    %c0_4 = arith.constant 0 : index
    %c1 = arith.constant 1 : index
    %5 = vector.load %arg3[%c0_4, %c1] : memref<32x2xf32, #tpu.memory_space<vmem>>, vector<32x1xf32>
    %c0_5 = arith.constant 0 : index
    %c0_6 = arith.constant 0 : index
    %6 = vector.load %arg4[%c0_5, %c0_6] : memref<2x128xf32, #tpu.memory_space<vmem>>, vector<1x128xf32>
    %c1_7 = arith.constant 1 : index
    %c0_8 = arith.constant 0 : index
    %7 = vector.load %arg4[%c1_7, %c0_8] : memref<2x128xf32, #tpu.memory_space<vmem>>, vector<1x128xf32>
    %c0_9 = arith.constant 0 : index
    %c0_10 = arith.constant 0 : index
    %8 = vector.load %arg6[%c0_9, %c0_10] : memref<16x128xf32, #tpu.memory_space<vmem>>, vector<16x128xf32>
    %c0_11 = arith.constant 0 : index
    %c0_12 = arith.constant 0 : index
    %c0_13 = arith.constant 0 : index
    %9 = vector.load %arg1[%c0_11, %c0_12, %c0_13] : memref<2x16x128xf32, #tpu.memory_space<vmem>>, vector<1x16x128xf32>
    %10 = vector.shape_cast %9 : vector<1x16x128xf32> to vector<16x128xf32>
    %11 = tpu.concatenate %8, %10 in 0 : vector<16x128xf32>, vector<16x128xf32> -> vector<32x128xf32>
    %cst = arith.constant dense<0.000000e+00> : vector<96x128xf32>
    %12 = tpu.matmul %3, %11, %cst {dimension_numbers = #tpu.dot_dimension_numbers<[1], [0], [0], [1], [0, 0, 1, 1], [], []>} : vector<96x32xf32>, vector<32x128xf32>, vector<96x128xf32> -> vector<96x128xf32>
    %13 = vector.extract_strided_slice %12 {offsets = [32, 0], sizes = [32, 128], strides = [1, 1]} : vector<96x128xf32> to vector<32x128xf32>
    %14 = vector.extract_strided_slice %12 {offsets = [0, 0], sizes = [32, 128], strides = [1, 1]} : vector<96x128xf32> to vector<32x128xf32>
    %c1_i32 = arith.constant 1 : i32
    %15 = tpu.dynamic_rotate %14 by %c1_i32 dim 1 : vector<32x128xf32>, i32 -> vector<32x128xf32>
    %16 = vector.broadcast %6 : vector<1x128xf32> to vector<32x128xf32>
    %17 = arith.mulf %15, %16 : vector<32x128xf32>
    %18 = arith.addf %13, %17 : vector<32x128xf32>
    %19 = vector.extract_strided_slice %12 {offsets = [64, 0], sizes = [32, 128], strides = [1, 1]} : vector<96x128xf32> to vector<32x128xf32>
    %c127_i32 = arith.constant 127 : i32
    %20 = tpu.dynamic_rotate %19 by %c127_i32 dim 1 : vector<32x128xf32>, i32 -> vector<32x128xf32>
    %21 = vector.broadcast %7 : vector<1x128xf32> to vector<32x128xf32>
    %22 = arith.mulf %20, %21 : vector<32x128xf32>
    %23 = arith.addf %18, %22 : vector<32x128xf32>
    %cst_14 = arith.constant dense<0.000000e+00> : vector<32xf32>
    %24 = vector.multi_reduction <add>, %23, %cst_14 [1] : vector<32x128xf32> to vector<32xf32>
    %25 = vector.shape_cast %24 : vector<32xf32> to vector<32x1xf32>
    %26 = arith.mulf %23, %23 : vector<32x128xf32>
    %cst_15 = arith.constant dense<0.000000e+00> : vector<32xf32>
    %27 = vector.multi_reduction <add>, %26, %cst_15 [1] : vector<32x128xf32> to vector<32xf32>
    %28 = vector.shape_cast %27 : vector<32xf32> to vector<32x1xf32>
    %cst_16 = arith.constant 7.812500e-03 : f32
    %29 = vector.broadcast %cst_16 : f32 to vector<32x1xf32>
    %30 = arith.mulf %25, %29 : vector<32x1xf32>
    %cst_17 = arith.constant 7.812500e-03 : f32
    %31 = vector.broadcast %cst_17 : f32 to vector<32x1xf32>
    %32 = arith.mulf %28, %31 : vector<32x1xf32>
    %33 = arith.mulf %30, %30 : vector<32x1xf32>
    %34 = arith.subf %32, %33 : vector<32x1xf32>
    %cst_18 = arith.constant 0.000000e+00 : f32
    %35 = vector.broadcast %cst_18 : f32 to vector<32x1xf32>
    %36 = arith.maximumf %34, %35 : vector<32x1xf32>
    %cst_19 = arith.constant 9.99999974E-6 : f32
    %37 = vector.broadcast %cst_19 : f32 to vector<32x1xf32>
    %38 = arith.addf %36, %37 : vector<32x1xf32>
    %39 = math.rsqrt %38 : vector<32x1xf32>
    %40 = arith.mulf %4, %39 : vector<32x1xf32>
    %41 = arith.mulf %30, %40 : vector<32x1xf32>
    %42 = arith.subf %5, %41 : vector<32x1xf32>
    %43 = vector.broadcast %40 : vector<32x1xf32> to vector<32x128xf32>
    %44 = arith.mulf %23, %43 : vector<32x128xf32>
    %45 = vector.broadcast %42 : vector<32x1xf32> to vector<32x128xf32>
    %46 = arith.addf %44, %45 : vector<32x128xf32>
    %cst_20 = arith.constant 1.000000e-01 : f32
    %47 = vector.broadcast %cst_20 : f32 to vector<32x128xf32>
    %48 = arith.mulf %47, %46 : vector<32x128xf32>
    %49 = arith.maximumf %46, %48 : vector<32x128xf32>
    %50 = vector.extract_strided_slice %49 {offsets = [0, 0], sizes = [16, 128], strides = [1, 1]} : vector<32x128xf32> to vector<16x128xf32>
    %51 = vector.extract_strided_slice %49 {offsets = [16, 0], sizes = [16, 128], strides = [1, 1]} : vector<32x128xf32> to vector<16x128xf32>
    %c0_21 = arith.constant 0 : index
    %c0_22 = arith.constant 0 : index
    %c0_23 = arith.constant 0 : index
    %52 = vector.load %arg5[%c0_21, %c0_22, %c0_23] : memref<2x16x128xf32, #tpu.memory_space<vmem>>, vector<1x16x128xf32>
    %53 = vector.shape_cast %52 : vector<1x16x128xf32> to vector<16x128xf32>
    %54 = vector.shape_cast %51 : vector<16x128xf32> to vector<1x16x128xf32>
    tpu.vector_store %arg5[%c0_21, %c0_22, %c0_23], %54 {strides = array<i32>} : memref<2x16x128xf32, #tpu.memory_space<vmem>>, vector<1x16x128xf32>,
    %c1_24 = arith.constant 1 : index
    %c0_25 = arith.constant 0 : index
    %c0_26 = arith.constant 0 : index
    %55 = vector.load %arg1[%c1_24, %c0_25, %c0_26] : memref<2x16x128xf32, #tpu.memory_space<vmem>>, vector<1x16x128xf32>
    %56 = vector.shape_cast %55 : vector<1x16x128xf32> to vector<16x128xf32>
    %57 = tpu.concatenate %50, %56 in 0 : vector<16x128xf32>, vector<16x128xf32> -> vector<32x128xf32>
    %cst_27 = arith.constant dense<0.000000e+00> : vector<96x128xf32>
    %58 = tpu.matmul %3, %57, %cst_27 {dimension_numbers = #tpu.dot_dimension_numbers<[1], [0], [0], [1], [0, 0, 1, 1], [], []>} : vector<96x32xf32>, vector<32x128xf32>, vector<96x128xf32> -> vector<96x128xf32>
    %59 = vector.extract_strided_slice %58 {offsets = [32, 0], sizes = [32, 128], strides = [1, 1]} : vector<96x128xf32> to vector<32x128xf32>
    %60 = vector.extract_strided_slice %58 {offsets = [0, 0], sizes = [32, 128], strides = [1, 1]} : vector<96x128xf32> to vector<32x128xf32>
    %c1_i32_28 = arith.constant 1 : i32
    %61 = tpu.dynamic_rotate %60 by %c1_i32_28 dim 1 : vector<32x128xf32>, i32 -> vector<32x128xf32>
    %62 = vector.broadcast %6 : vector<1x128xf32> to vector<32x128xf32>
    %63 = arith.mulf %61, %62 : vector<32x128xf32>
    %64 = arith.addf %59, %63 : vector<32x128xf32>
    %65 = vector.extract_strided_slice %58 {offsets = [64, 0], sizes = [32, 128], strides = [1, 1]} : vector<96x128xf32> to vector<32x128xf32>
    %c127_i32_29 = arith.constant 127 : i32
    %66 = tpu.dynamic_rotate %65 by %c127_i32_29 dim 1 : vector<32x128xf32>, i32 -> vector<32x128xf32>
    %67 = vector.broadcast %7 : vector<1x128xf32> to vector<32x128xf32>
    %68 = arith.mulf %66, %67 : vector<32x128xf32>
    %69 = arith.addf %64, %68 : vector<32x128xf32>
    %cst_30 = arith.constant dense<0.000000e+00> : vector<32xf32>
    %70 = vector.multi_reduction <add>, %69, %cst_30 [1] : vector<32x128xf32> to vector<32xf32>
    %71 = vector.shape_cast %70 : vector<32xf32> to vector<32x1xf32>
    %72 = arith.mulf %69, %69 : vector<32x128xf32>
    %cst_31 = arith.constant dense<0.000000e+00> : vector<32xf32>
    %73 = vector.multi_reduction <add>, %72, %cst_31 [1] : vector<32x128xf32> to vector<32xf32>
    %74 = vector.shape_cast %73 : vector<32xf32> to vector<32x1xf32>
    %cst_32 = arith.constant 7.812500e-03 : f32
    %75 = vector.broadcast %cst_32 : f32 to vector<32x1xf32>
    %76 = arith.mulf %71, %75 : vector<32x1xf32>
    %cst_33 = arith.constant 7.812500e-03 : f32
    %77 = vector.broadcast %cst_33 : f32 to vector<32x1xf32>
    %78 = arith.mulf %74, %77 : vector<32x1xf32>
    %79 = arith.mulf %76, %76 : vector<32x1xf32>
    %80 = arith.subf %78, %79 : vector<32x1xf32>
    %cst_34 = arith.constant 0.000000e+00 : f32
    %81 = vector.broadcast %cst_34 : f32 to vector<32x1xf32>
    %82 = arith.maximumf %80, %81 : vector<32x1xf32>
    %cst_35 = arith.constant 9.99999974E-6 : f32
    %83 = vector.broadcast %cst_35 : f32 to vector<32x1xf32>
    %84 = arith.addf %82, %83 : vector<32x1xf32>
    %85 = math.rsqrt %84 : vector<32x1xf32>
    %86 = arith.mulf %4, %85 : vector<32x1xf32>
    %87 = arith.mulf %76, %86 : vector<32x1xf32>
    %88 = arith.subf %5, %87 : vector<32x1xf32>
    %89 = vector.broadcast %86 : vector<32x1xf32> to vector<32x128xf32>
    %90 = arith.mulf %69, %89 : vector<32x128xf32>
    %91 = vector.broadcast %88 : vector<32x1xf32> to vector<32x128xf32>
    %92 = arith.addf %90, %91 : vector<32x128xf32>
    %cst_36 = arith.constant 1.000000e-01 : f32
    %93 = vector.broadcast %cst_36 : f32 to vector<32x128xf32>
    %94 = arith.mulf %93, %92 : vector<32x128xf32>
    %95 = arith.maximumf %92, %94 : vector<32x128xf32>
    %96 = vector.extract_strided_slice %95 {offsets = [0, 0], sizes = [16, 128], strides = [1, 1]} : vector<32x128xf32> to vector<16x128xf32>
    %97 = vector.extract_strided_slice %95 {offsets = [16, 0], sizes = [16, 128], strides = [1, 1]} : vector<32x128xf32> to vector<16x128xf32>
    %c1_37 = arith.constant 1 : index
    %c0_38 = arith.constant 0 : index
    %c0_39 = arith.constant 0 : index
    %98 = vector.load %arg5[%c1_37, %c0_38, %c0_39] : memref<2x16x128xf32, #tpu.memory_space<vmem>>, vector<1x16x128xf32>
    %99 = vector.shape_cast %98 : vector<1x16x128xf32> to vector<16x128xf32>
    %100 = vector.shape_cast %97 : vector<16x128xf32> to vector<1x16x128xf32>
    tpu.vector_store %arg5[%c1_37, %c0_38, %c0_39], %100 {strides = array<i32>} : memref<2x16x128xf32, #tpu.memory_space<vmem>>, vector<1x16x128xf32>,
    %c0_40 = arith.constant 0 : index
    %c0_41 = arith.constant 0 : index
    %101 = vector.load %arg6[%c0_40, %c0_41] : memref<16x128xf32, #tpu.memory_space<vmem>>, vector<16x128xf32>
    tpu.vector_store %arg6[%c0_40, %c0_41], %96 {strides = array<i32>} : memref<16x128xf32, #tpu.memory_space<vmem>>, vector<16x128xf32>,
    return
  }
  func.func @transform_0(%arg0: i32) -> (i32, i32, i32) {
    %c0_i32 = arith.constant 0 : i32
    %c0_i32_0 = arith.constant 0 : i32
    %c0_i32_1 = arith.constant 0 : i32
    return %arg0, %c0_i32, %c0_i32_0 : i32, i32, i32
  }
  func.func @transform_1(%arg0: i32) -> (i32, i32) {
    %c0_i32 = arith.constant 0 : i32
    %c0_i32_0 = arith.constant 0 : i32
    %c0_i32_1 = arith.constant 0 : i32
    return %c0_i32, %c0_i32_0 : i32, i32
  }
  func.func @transform_2(%arg0: i32) -> (i32, i32) {
    %c0_i32 = arith.constant 0 : i32
    %c0_i32_0 = arith.constant 0 : i32
    %c0_i32_1 = arith.constant 0 : i32
    return %c0_i32, %c0_i32_0 : i32, i32
  }
  func.func @transform_3(%arg0: i32) -> (i32, i32) {
    %c0_i32 = arith.constant 0 : i32
    %c0_i32_0 = arith.constant 0 : i32
    %c0_i32_1 = arith.constant 0 : i32
    return %c0_i32, %c0_i32_0 : i32, i32
  }
  func.func @transform_4(%arg0: i32) -> (i32, i32, i32) {
    %c0_i32 = arith.constant 0 : i32
    %c0_i32_0 = arith.constant 0 : i32
    %c0_i32_1 = arith.constant 0 : i32
    return %arg0, %c0_i32, %c0_i32_0 : i32, i32, i32
  }
  func.func @transform_5(%arg0: i32) -> (i32, i32) {
    %c0_i32 = arith.constant 0 : i32
    %c0_i32_0 = arith.constant 0 : i32
    %c0_i32_1 = arith.constant 0 : i32
    return %c0_i32, %c0_i32_0 : i32, i32
  }
}

</mosaic_0001>

<llo_original>
// kernel: rnn_forward_pallas.1
$region0: #{rnn_forward_pallas.1}
  #allocation0 [shape = 'u32[]', space=smem, size = 0x4, offset = 0x4, fixed_abs, tag = 'smem constant byte address 0x4 - core index']
  #allocation1 [shape = 'u32[144,128]{1,0:T(1,128)}', space=vmem, size = 0x12000, scoped, tag = 'internal scratch']
  %s0 = inlined_call_operand.vmem [shape: f32[4,16,128], index: 0, kind: input, shape index: {}]
  %s1 = inlined_call_operand.vmem [shape: f32[96,32], index: 1, kind: input, shape index: {}]
  %s2 = inlined_call_operand.vmem [shape: f32[32,2], index: 2, kind: input, shape index: {}]
  %s3 = inlined_call_operand.vmem [shape: f32[2,128], index: 3, kind: input, shape index: {}]
  %s4 = inlined_call_operand.vmem [shape: f32[4,16,128], index: 4, kind: output, shape index: {0}]
  %s5 = inlined_call_operand.vmem [shape: f32[16,128], index: 5, kind: output, shape index: {1}]
  %6 = xla_tuple %s4, %s5
  %s7 = sld [smem:[#allocation0]]
  $region61: #{rnn_forward_pallas.1} parent=0
    _
  %s9 = ssub.s32 1, %s7
  %s10 = scalar_select 0, %s9, %s7
  loop: start=0, step=1, limit=4
  $region2: #{rnn_forward_pallas.1} parent=0 // loop_pre_header
    _
  $region3: #{rnn_forward_pallas.1} parent=0 // loop_header
    %s12 = sphi 0, %s16
    %p13 = scmp.ge.s32.totalorder %s12, 4
    %s22 = sphi 0, %s24
    %s25 = sphi 0, %s22
    %s26 = sphi 0, %s25
    %s42 = sphi 0, %s26
    %s46 = sphi 0, %s46
    %s48 = sphi 0, %s46
    %s49 = sphi 0, %s48
    %s63 = sphi 0, %s49
    %s67 = sphi 0, %s67
    %s69 = sphi 0, %s67
    %s70 = sphi 0, %s69
    %s84 = sphi 0, %s70
    %s88 = sphi 0, %s88
    %s90 = sphi 0, %s88
    %s91 = sphi 0, %s90
    %s105 = sphi 0, %s91
    %s111 = sphi 0, %s113
    %s114 = sphi 0, %s111
    %s115 = sphi 0, %s114
    %s131 = sphi 0, %s115
    %s135 = sphi 0, %s135
    %s137 = sphi 0, %s135
    %s138 = sphi 0, %s137
    %s152 = sphi 0, %s138
  $region4: #{rnn_forward_pallas.1} parent=0 // loop_header_branch
    %15 = sbr.rel (%p13) target = $region8
  $region5: #{rnn_forward_pallas.1} parent=0 // loop_body
    %s17 = ssub.s32 %s12, 1
    %s18 = ssub.s32 %s12, 2
    %s19 = sadd.s32 %s12, 1
    %s20 = ssub.s32 %s12, %s19
    %p21 = scmp.eq.s32.totalorder %s20, 0
    %s23 = sadd.s32 %s22, 1
    %s24 = scalar_select %p21, %s22, %s23
    %p27 = pneg %p21
    %p28 = scmp.eq.s32.totalorder %s12, 1
    %p29 = por %p27, %p28
    %p30 = scmp.ne.s32.totalorder %s22, %s25
    %p31 = scmp.eq.s32.totalorder %s12, 0
    %p32 = por %p30, %p31
    %p33 = scmp.ne.s32.totalorder %s22, %s25
    %p34 = scmp.eq.s32.totalorder %s17, 1
    %p35 = por %p33, %p34
    %p36 = scmp.ne.s32.totalorder %s25, %s26
    %p37 = scmp.eq.s32.totalorder %s17, 0
    %p38 = por %p36, %p37
    %p39 = scmp.ne.s32.totalorder %s25, %s26
    %p40 = scmp.eq.s32.totalorder %s18, 1
    %p41 = por %p39, %p40
    %p43 = scmp.ne.s32.totalorder %s26, %s42
    %p44 = scmp.eq.s32.totalorder %s18, 0
    %p45 = por %p43, %p44
    %s47 = sadd.s32 %s46, 1
    %p50 = scmp.eq.s32.totalorder %s12, 1
    %p51 = scmp.ne.s32.totalorder %s46, %s48
    %p52 = scmp.eq.s32.totalorder %s12, 0
    %p53 = por %p51, %p52
    %p54 = scmp.ne.s32.totalorder %s46, %s48
    %p55 = scmp.eq.s32.totalorder %s17, 1
    %p56 = por %p54, %p55
    %p57 = scmp.ne.s32.totalorder %s48, %s49
    %p58 = scmp.eq.s32.totalorder %s17, 0
    %p59 = por %p57, %p58
    %p60 = scmp.ne.s32.totalorder %s48, %s49
    %p61 = scmp.eq.s32.totalorder %s18, 1
    %p62 = por %p60, %p61
    %p64 = scmp.ne.s32.totalorder %s49, %s63
    %p65 = scmp.eq.s32.totalorder %s18, 0
    %p66 = por %p64, %p65
    %s68 = sadd.s32 %s67, 1
    %p71 = scmp.eq.s32.totalorder %s12, 1
    %p72 = scmp.ne.s32.totalorder %s67, %s69
    %p73 = scmp.eq.s32.totalorder %s12, 0
    %p74 = por %p72, %p73
    %p75 = scmp.ne.s32.totalorder %s67, %s69
    %p76 = scmp.eq.s32.totalorder %s17, 1
    %p77 = por %p75, %p76
    %p78 = scmp.ne.s32.totalorder %s69, %s70
    %p79 = scmp.eq.s32.totalorder %s17, 0
    %p80 = por %p78, %p79
    %p81 = scmp.ne.s32.totalorder %s69, %s70
    %p82 = scmp.eq.s32.totalorder %s18, 1
    %p83 = por %p81, %p82
    %p85 = scmp.ne.s32.totalorder %s70, %s84
    %p86 = scmp.eq.s32.totalorder %s18, 0
    %p87 = por %p85, %p86
    %s89 = sadd.s32 %s88, 1
    %p92 = scmp.eq.s32.totalorder %s12, 1
    %p93 = scmp.ne.s32.totalorder %s88, %s90
    %p94 = scmp.eq.s32.totalorder %s12, 0
    %p95 = por %p93, %p94
    %p96 = scmp.ne.s32.totalorder %s88, %s90
    %p97 = scmp.eq.s32.totalorder %s17, 1
    %p98 = por %p96, %p97
    %p99 = scmp.ne.s32.totalorder %s90, %s91
    %p100 = scmp.eq.s32.totalorder %s17, 0
    %p101 = por %p99, %p100
    %p102 = scmp.ne.s32.totalorder %s90, %s91
    %p103 = scmp.eq.s32.totalorder %s18, 1
    %p104 = por %p102, %p103
    %p106 = scmp.ne.s32.totalorder %s91, %s105
    %p107 = scmp.eq.s32.totalorder %s18, 0
    %p108 = por %p106, %p107
    %s109 = ssub.s32 %s12, %s19
    %p110 = scmp.eq.s32.totalorder %s109, 0
    %s112 = sadd.s32 %s111, 1
    %s113 = scalar_select %p110, %s111, %s112
    %p116 = pneg %p110
    %p117 = scmp.eq.s32.totalorder %s12, 1
    %p118 = por %p116, %p117
    %p119 = scmp.ne.s32.totalorder %s111, %s114
    %p120 = scmp.eq.s32.totalorder %s12, 0
    %p121 = por %p119, %p120
    %p122 = scmp.ne.s32.totalorder %s111, %s114
    %p123 = scmp.eq.s32.totalorder %s17, 1
    %p124 = por %p122, %p123
    %p125 = scmp.ne.s32.totalorder %s114, %s115
    %p126 = scmp.eq.s32.totalorder %s17, 0
    %p127 = por %p125, %p126
    %p128 = scmp.ne.s32.totalorder %s114, %s115
    %p129 = scmp.eq.s32.totalorder %s18, 1
    %p130 = por %p128, %p129
    %p132 = scmp.ne.s32.totalorder %s115, %s131
    %p133 = scmp.eq.s32.totalorder %s18, 0
    %p134 = por %p132, %p133
    %s136 = sadd.s32 %s135, 1
    %p139 = scmp.eq.s32.totalorder %s12, 1
    %p140 = scmp.ne.s32.totalorder %s135, %s137
    %p141 = scmp.eq.s32.totalorder %s12, 0
    %p142 = por %p140, %p141
    %p143 = scmp.ne.s32.totalorder %s135, %s137
    %p144 = scmp.eq.s32.totalorder %s17, 1
    %p145 = por %p143, %p144
    %p146 = scmp.ne.s32.totalorder %s137, %s138
    %p147 = scmp.eq.s32.totalorder %s17, 0
    %p148 = por %p146, %p147
    %p149 = scmp.ne.s32.totalorder %s137, %s138
    %p150 = scmp.eq.s32.totalorder %s18, 1
    %p151 = por %p149, %p150
    %p153 = scmp.ne.s32.totalorder %s138, %s152
    %p154 = scmp.eq.s32.totalorder %s18, 0
    %p155 = por %p153, %p154
    %p156 = scmp.le.s32.totalorder 1, %s12
    %p157 = scmp.lt.s32.totalorder %s12, 3
    %p158 = pnand %p156, %p157
    %p159 = pneg %p158
    // Predicated region
    $region9: #{rnn_forward_pallas.1} parent=5 // pred_check
      _
    $region10: #{rnn_forward_pallas.1} parent=5 // pred_check_branch
      %161 = sbr.rel (%p158) target = $region12
    $region11: #{rnn_forward_pallas.1} parent=5 // pred_region
      %s162 = ssub.s32 %s12, 1
      // Predicated region
      $region13: #{rnn_forward_pallas.1} parent=11 // pred_check
        %p163 = pneg %p59
      $region14: #{rnn_forward_pallas.1} parent=11 // pred_check_branch
        %165 = sbr.rel (%p163) target = $region16
      $region15: #{rnn_forward_pallas.1} parent=11 // pred_region
        _
      $region16: #{rnn_forward_pallas.1} parent=11 // pred_fallthru
        _
      // Predicated region
      $region17: #{rnn_forward_pallas.1} parent=11 // pred_check
        %p166 = pneg %p80
      $region18: #{rnn_forward_pallas.1} parent=11 // pred_check_branch
        %168 = sbr.rel (%p166) target = $region20
      $region19: #{rnn_forward_pallas.1} parent=11 // pred_region
        _
      $region20: #{rnn_forward_pallas.1} parent=11 // pred_fallthru
        _
      // Predicated region
      $region21: #{rnn_forward_pallas.1} parent=11 // pred_check
        %p169 = pneg %p101
      $region22: #{rnn_forward_pallas.1} parent=11 // pred_check_branch
        %171 = sbr.rel (%p169) target = $region24
      $region23: #{rnn_forward_pallas.1} parent=11 // pred_region
        _
      $region24: #{rnn_forward_pallas.1} parent=11 // pred_fallthru
        _
    $region12: #{rnn_forward_pallas.1} parent=5 // pred_fallthru
      _
    %p172 = scmp.lt.s32.totalorder %s12, 2
    // Predicated region
    $region25: #{rnn_forward_pallas.1} parent=5 // pred_check
      %p173 = pneg %p172
    $region26: #{rnn_forward_pallas.1} parent=5 // pred_check_branch
      %175 = sbr.rel (%p173) target = $region28
    $region27: #{rnn_forward_pallas.1} parent=5 // pred_region
      // Predicated region
      $region29: #{rnn_forward_pallas.1} parent=27 // pred_check
        %p176 = pneg %p32
      $region30: #{rnn_forward_pallas.1} parent=27 // pred_check_branch
        %178 = sbr.rel (%p176) target = $region32
      $region31: #{rnn_forward_pallas.1} parent=27 // pred_region
        %s179 = smul.u32 2, %s12
        %p180 = scmp.lt.s32.totalorder %s179, 3
        %s181 = scalar_select %p180, %s179, 3
        %s182 = smul.addr %s181, 2
        %s183 = smul.addr %s182, 8
        %s184 = scalar_lea.vmem %s0, %s183
        %s185 = smul.u32 2, %s12
      $region32: #{rnn_forward_pallas.1} parent=27 // pred_fallthru
        _
    $region28: #{rnn_forward_pallas.1} parent=5 // pred_fallthru
      _
    %p186 = scmp.le.s32.totalorder 1, %s12
    %p187 = scmp.lt.s32.totalorder %s12, 3
    %p188 = pnand %p186, %p187
    %p189 = pneg %p188
    // Predicated region
    $region33: #{rnn_forward_pallas.1} parent=5 // pred_check
      _
    $region34: #{rnn_forward_pallas.1} parent=5 // pred_check_branch
      %191 = sbr.rel (%p188) target = $region36
    $region35: #{rnn_forward_pallas.1} parent=5 // pred_region
      %s192 = ssub.s32 %s12, 1
      %s193 = smul.u32 2, %s17
      %p194 = scmp.lt.s32.totalorder %s193, 3
      %s195 = scalar_select %p194, %s193, 3
      %s196 = smul.addr %s195, 2
      %s197 = smul.addr %s196, 8
      %s198 = scalar_lea.vmem %s0, %s197
      %p199 = pneg %p38
      %p200 = pneg %p35
      %p201 = pneg %p59
      %p202 = pneg %p56
      %p203 = pneg %p80
      %p204 = pneg %p77
      %p205 = pneg %p101
      %p206 = pneg %p98
      %p207 = pneg %p127
      %p208 = pneg %p124
      %s209 = smul.u32 2, %s17
      %p210 = scmp.lt.s32.totalorder %s209, 3
      %s211 = scalar_select %p210, %s209, 3
      %s212 = smul.addr %s211, 2
      %s213 = smul.addr %s212, 8
      %s214 = scalar_lea.vmem %s4, %s213
      %p215 = pneg %p148
      %p216 = pneg %p145
      %s217 = smul.u32 2, %s17
      %p218 = scmp.lt.s32.totalorder %s217, 3
      %s219 = scalar_select %p218, %s217, 3
      %s220 = smul.addr %s219, 2
      %s221 = smul.addr %s220, 8
      %s222 = scalar_lea.vmem %s0, %s221
      %s223 = smul.u32 2, %s17
      %s224 = smul.u32 2, %s17
      %p225 = scmp.lt.s32.totalorder %s224, 3
      %s226 = scalar_select %p225, %s224, 3
      %s227 = smul.addr %s226, 2
      %s228 = smul.addr %s227, 8
      %s229 = scalar_lea.vmem %s4, %s228
      %s230 = smul.u32 2, %s17
      %p231 = scmp.eq.s32.totalorder %s17, 0
      // Predicated region
      $region37: #{rnn_forward_pallas.1} parent=35 // pred_check
        %p232 = pneg %p231
      $region38: #{rnn_forward_pallas.1} parent=35 // pred_check_branch
        %234 = sbr.rel (%p232) target = $region40
      $region39: #{rnn_forward_pallas.1} parent=35 // pred_region
        %235 = vst [vmem:[%s5] sm:$0xff] 0.0
        %236 = vst [vmem:[%s5 + $0x8] sm:$0xff] 0.0
      $region40: #{rnn_forward_pallas.1} parent=35 // pred_fallthru
        _
      %v237 = vld [vmem:[%s1] sm:$0xff]
      %v238 = vld [vmem:[%s1 + $0x8] sm:$0xff]
      %v239 = vld [vmem:[%s1 + $0x10] sm:$0xff]
      %v240 = vld [vmem:[%s1 + $0x18] sm:$0xff]
      %v241 = vld [vmem:[%s1 + $0x20] sm:$0xff]
      %v242 = vld [vmem:[%s1 + $0x28] sm:$0xff]
      %v243 = vld [vmem:[%s1 + $0x30] sm:$0xff]
      %v244 = vld [vmem:[%s1 + $0x38] sm:$0xff]
      %v245 = vld [vmem:[%s1 + $0x40] sm:$0xff]
      %v246 = vld [vmem:[%s1 + $0x48] sm:$0xff]
      %v247 = vld [vmem:[%s1 + $0x50] sm:$0xff]
      %v248 = vld [vmem:[%s1 + $0x58] sm:$0xff]
      %v249 = vld [vmem:[%s2] sm:$0xff]
      %v250 = vld [vmem:[%s2 + $0x8] sm:$0xff]
      %v251 = vld [vmem:[%s2 + $0x10] sm:$0xff]
      %v252 = vld [vmem:[%s2 + $0x18] sm:$0xff]
      %v253 = vld [vmem:[%s3] sm:$0x1]
      %v254 = vld [vmem:[%s3 + $0x1] sm:$0x1]
      %v255 = vld [vmem:[%s5] sm:$0xff]
      %v256 = vld [vmem:[%s5 + $0x8] sm:$0xff]
      %v257 = vld [vmem:[%s222] sm:$0xff]
      %v258 = vld [vmem:[%s222 + $0x8] sm:$0xff]
      %vm259 = vcmask 261120
      %v261 = vsel %vm259, %v237, 0
      %v264 = vsel %vm259, %v238, 0
      %v267 = vsel %vm259, %v239, 0
      %v270 = vsel %vm259, %v240, 0
      %v273 = vsel %vm259, %v241, 0
      %v276 = vsel %vm259, %v242, 0
      %v279 = vsel %vm259, %v243, 0
      %v282 = vsel %vm259, %v244, 0
      %v285 = vsel %vm259, %v245, 0
      %v288 = vsel %vm259, %v246, 0
      %v291 = vsel %vm259, %v247, 0
      %v294 = vsel %vm259, %v248, 0
      %296 = vmatprep.subr.mxu0 0.0
      %297 = vmatpush1.msra.mxu0 0.0
      %298 = vmatprep.subr.mxu0 0.0
      %299 = vmatpush1.msra.mxu0 0.0
      %300 = vmatprep.subr.mxu0 0.0
      %301 = vmatpush1.msra.mxu0 0.0
      %302 = vmatprep.subr.mxu0 0.0
      %303 = vmatpush1.msra.mxu0 0.0
      %304 = vmatprep.subr.mxu0 0.0
      %305 = vmatpush1.msra.mxu0 0.0
      %306 = vmatprep.subr.mxu0 0.0
      %307 = vmatpush1.msra.mxu0 0.0
      %308 = vmatprep.subr.mxu0 0.0
      %309 = vmatpush1.msra.mxu0 0.0
      %310 = vmatprep.subr.mxu0 0.0
      %311 = vmatpush1.msra.mxu0 0.0
      %312 = vmatprep.subr.mxu0 0.0
      %313 = vmatpush1.msra.mxu0 0.0
      %314 = vmatprep.subr.mxu0 0.0
      %315 = vmatpush1.msra.mxu0 0.0
      %316 = vmatprep.subr.mxu0 0.0
      %317 = vmatpush1.msra.mxu0 0.0
      %318 = vmatprep.subr.mxu0 0.0
      %319 = vmatpush1.msra.mxu0 0.0
      %320 = vmatprep.subr.mxu0 0.0
      %321 = vmatpush1.msra.mxu0 %v258
      %322 = vmatprep.subr.mxu0 0.0
      %323 = vmatpush1.msra.mxu0 %v257
      %324 = vmatprep.subr.mxu0 0.0
      %325 = vmatpush1.msra.mxu0 %v256
      %326 = vmatprep.subr.mxu0 0.0
      %327 = vmatpush1.msra.mxu0 %v255
      %328 = vmatprep.subr.mxu0 0.0
      %329 = vmatpush2.msra.mxu0 0.0
      %330 = vmatprep.subr.mxu0 0.0
      %331 = vmatpush2.msra.mxu0 0.0
      %332 = vmatprep.subr.mxu0 0.0
      %333 = vmatpush2.msra.mxu0 0.0
      %334 = vmatprep.subr.mxu0 0.0
      %335 = vmatpush2.msra.mxu0 0.0
      %336 = vmatprep.subr.mxu0 0.0
      %337 = vmatpush2.msra.mxu0 0.0
      %338 = vmatprep.subr.mxu0 0.0
      %339 = vmatpush2.msra.mxu0 0.0
      %340 = vmatprep.subr.mxu0 0.0
      %341 = vmatpush2.msra.mxu0 0.0
      %342 = vmatprep.subr.mxu0 0.0
      %343 = vmatpush2.msra.mxu0 0.0
      %344 = vmatprep.subr.mxu0 0.0
      %345 = vmatpush2.msra.mxu0 0.0
      %346 = vmatprep.subr.mxu0 0.0
      %347 = vmatpush2.msra.mxu0 0.0
      %348 = vmatprep.subr.mxu0 0.0
      %349 = vmatpush2.msra.mxu0 0.0
      %350 = vmatprep.subr.mxu0 0.0
      %351 = vmatpush2.msra.mxu0 0.0
      %352 = vmatprep.subr.mxu0 0.0
      %353 = vmatpush2.msra.mxu0 0.0
      %354 = vmatprep.subr.mxu0 0.0
      %355 = vmatpush2.msra.mxu0 0.0
      %356 = vmatprep.subr.mxu0 0.0
      %357 = vmatpush2.msra.mxu0 0.0
      %358 = vmatprep.subr.mxu0 0.0
      %359 = vmatpush2.msra.mxu0 0.0
      %360 = vmatprep.mubr.f32.mxu0 0.0
      %361 = vmatmul.mubr.f32.gmra.mxu0 %v261
      %v362 = vpop.f32.mrf.mxu0
      %v363 = vadd.f32 0.0, %v362
      %v364 = vpop.f32.mrf.mxu0
      %365 = vmatprep.mubr.f32.mxu0 0.0
      %366 = vmatmul.mubr.f32.gmra.mxu0 %v264
      %v367 = vpop.f32.mrf.mxu0
      %v368 = vadd.f32 0.0, %v367
      %v369 = vpop.f32.mrf.mxu0
      %370 = vmatprep.mubr.f32.mxu0 0.0
      %371 = vmatmul.mubr.f32.gmra.mxu0 %v267
      %v372 = vpop.f32.mrf.mxu0
      %v373 = vadd.f32 0.0, %v372
      %v374 = vpop.f32.mrf.mxu0
      %375 = vmatprep.mubr.f32.mxu0 0.0
      %376 = vmatmul.mubr.f32.gmra.mxu0 %v270
      %v377 = vpop.f32.mrf.mxu0
      %v378 = vadd.f32 0.0, %v377
      %v379 = vpop.f32.mrf.mxu0
      %380 = vmatprep.mubr.f32.mxu0 0.0
      %381 = vmatmul.mubr.f32.gmra.mxu0 %v273
      %v382 = vpop.f32.mrf.mxu0
      %v383 = vadd.f32 0.0, %v382
      %v384 = vpop.f32.mrf.mxu0
      %385 = vmatprep.mubr.f32.mxu0 0.0
      %386 = vmatmul.mubr.f32.gmra.mxu0 %v276
      %v387 = vpop.f32.mrf.mxu0
      %v388 = vadd.f32 0.0, %v387
      %v389 = vpop.f32.mrf.mxu0
      %390 = vmatprep.mubr.f32.mxu0 0.0
      %391 = vmatmul.mubr.f32.gmra.mxu0 %v279
      %v392 = vpop.f32.mrf.mxu0
      %v393 = vadd.f32 0.0, %v392
      %v394 = vpop.f32.mrf.mxu0
      %395 = vmatprep.mubr.f32.mxu0 0.0
      %396 = vmatmul.mubr.f32.gmra.mxu0 %v282
      %v397 = vpop.f32.mrf.mxu0
      %v398 = vadd.f32 0.0, %v397
      %v399 = vpop.f32.mrf.mxu0
      %400 = vmatprep.mubr.f32.mxu0 0.0
      %401 = vmatmul.mubr.f32.gmra.mxu0 %v285
      %v402 = vpop.f32.mrf.mxu0
      %v403 = vadd.f32 0.0, %v402
      %v404 = vpop.f32.mrf.mxu0
      %405 = vmatprep.mubr.f32.mxu0 0.0
      %406 = vmatmul.mubr.f32.gmra.mxu0 %v288
      %v407 = vpop.f32.mrf.mxu0
      %v408 = vadd.f32 0.0, %v407
      %v409 = vpop.f32.mrf.mxu0
      %410 = vmatprep.mubr.f32.mxu0 0.0
      %411 = vmatmul.mubr.f32.gmra.mxu0 %v291
      %v412 = vpop.f32.mrf.mxu0
      %v413 = vadd.f32 0.0, %v412
      %v414 = vpop.f32.mrf.mxu0
      %415 = vmatprep.mubr.f32.mxu0 0.0
      %416 = vmatmul.mubr.f32.gmra.mxu0 %v294
      %v417 = vpop.f32.mrf.mxu0
      %v418 = vadd.f32 0.0, %v417
      %v419 = vpop.f32.mrf.mxu0
      %420 = vdwg.mxu0
      %421 = vrot.lane.b32.xlu0 %v363, 1
      %v422 = vpop.permute.xlu0 %421
      %423 = vrot.lane.b32.xlu0 %v368, 1
      %v424 = vpop.permute.xlu0 %423
      %425 = vrot.lane.b32.xlu0 %v373, 1
      %v426 = vpop.permute.xlu0 %425
      %427 = vrot.lane.b32.xlu0 %v378, 1
      %v428 = vpop.permute.xlu0 %427
      %v429 = vlaneseq
      %v430 = vshrl.u32 %v429, 7
      %v431 = vsub.s32 0, %v430
      %v432 = vrot.slane %v253, %v431
      %v433 = vmul.f32 %v422, %v432
      %v434 = vmul.f32 %v424, %v432
      %v435 = vmul.f32 %v426, %v432
      %v436 = vmul.f32 %v428, %v432
      %v437 = vadd.f32 %v383, %v433
      %v438 = vadd.f32 %v388, %v434
      %v439 = vadd.f32 %v393, %v435
      %v440 = vadd.f32 %v398, %v436
      %441 = vrot.lane.b32.xlu0 %v403, 127
      %v442 = vpop.permute.xlu0 %441
      %443 = vrot.lane.b32.xlu0 %v408, 127
      %v444 = vpop.permute.xlu0 %443
      %445 = vrot.lane.b32.xlu0 %v413, 127
      %v446 = vpop.permute.xlu0 %445
      %447 = vrot.lane.b32.xlu0 %v418, 127
      %v448 = vpop.permute.xlu0 %447
      %v449 = vlaneseq
      %v450 = vshrl.u32 %v449, 7
      %v451 = vsub.s32 0, %v450
      %v452 = vrot.slane %v254, %v451
      %v453 = vmul.f32 %v442, %v452
      %v454 = vmul.f32 %v444, %v452
      %v455 = vmul.f32 %v446, %v452
      %v456 = vmul.f32 %v448, %v452
      %v457 = vadd.f32 %v437, %v453
      %v458 = vadd.f32 %v438, %v454
      %v459 = vadd.f32 %v439, %v455
      %v460 = vadd.f32 %v440, %v456
      %461 = vadd.xlane.f32.xlu0 %v457
      %v462 = vpop.xlane.xlu0 %461
      %463 = vadd.xlane.f32.xlu0 %v458
      %v464 = vpop.xlane.xlu0 %463
      %465 = vadd.xlane.f32.xlu0 %v459
      %v466 = vpop.xlane.xlu0 %465
      %467 = vadd.xlane.f32.xlu0 %v460
      %v468 = vpop.xlane.xlu0 %467
      %v469 = vmul.f32 %v457, %v457
      %v470 = vmul.f32 %v458, %v458
      %v471 = vmul.f32 %v459, %v459
      %v472 = vmul.f32 %v460, %v460
      %473 = vadd.xlane.f32.xlu0 %v469
      %v474 = vpop.xlane.xlu0 %473
      %475 = vadd.xlane.f32.xlu0 %v470
      %v476 = vpop.xlane.xlu0 %475
      %477 = vadd.xlane.f32.xlu0 %v471
      %v478 = vpop.xlane.xlu0 %477
      %479 = vadd.xlane.f32.xlu0 %v472
      %v480 = vpop.xlane.xlu0 %479
      %v481 = vmul.f32 %v462, 0.0078125
      %v482 = vmul.f32 %v464, 0.0078125
      %v483 = vmul.f32 %v466, 0.0078125
      %v484 = vmul.f32 %v468, 0.0078125
      %v485 = vmul.f32 %v474, 0.0078125
      %v486 = vmul.f32 %v476, 0.0078125
      %v487 = vmul.f32 %v478, 0.0078125
      %v488 = vmul.f32 %v480, 0.0078125
      %v489 = vmul.f32 %v481, %v481
      %v490 = vmul.f32 %v482, %v482
      %v491 = vmul.f32 %v483, %v483
      %v492 = vmul.f32 %v484, %v484
      %v493 = vsub.f32 %v485, %v489
      %v494 = vsub.f32 %v486, %v490
      %v495 = vsub.f32 %v487, %v491
      %v496 = vsub.f32 %v488, %v492
      %v497 = vmax.f32 %v493, 0.0
      %v498 = vmax.f32 %v494, 0.0
      %v499 = vmax.f32 %v495, 0.0
      %v500 = vmax.f32 %v496, 0.0
      %v501 = vadd.f32 %v497, 1e-05
      %v502 = vadd.f32 %v498, 1e-05
      %v503 = vadd.f32 %v499, 1e-05
      %v504 = vadd.f32 %v500, 1e-05
      %v505 = vrsqrt.pop %v501
      %v506 = vrsqrt.pop %v502
      %v507 = vrsqrt.pop %v503
      %v508 = vrsqrt.pop %v504
      %v509 = vmul.f32 %v249, %v505
      %v510 = vmul.f32 %v250, %v506
      %v511 = vmul.f32 %v251, %v507
      %v512 = vmul.f32 %v252, %v508
      %v513 = vmul.f32 %v481, %v509
      %v514 = vmul.f32 %v482, %v510
      %v515 = vmul.f32 %v483, %v511
      %v516 = vmul.f32 %v484, %v512
      %521 = vrot.lane.b32.xlu0 %v513, 1
      %v522 = vpop.permute.xlu0 %521
      %523 = vrot.lane.b32.xlu0 %v514, 1
      %v524 = vpop.permute.xlu0 %523
      %525 = vrot.lane.b32.xlu0 %v515, 1
      %v526 = vpop.permute.xlu0 %525
      %527 = vrot.lane.b32.xlu0 %v516, 1
      %v528 = vpop.permute.xlu0 %527
      %v533 = vsub.f32 %v249, %v522
      %v534 = vsub.f32 %v250, %v524
      %v535 = vsub.f32 %v251, %v526
      %v536 = vsub.f32 %v252, %v528
      %538 = vset.pattern.permute.xlu0 0
      %539 = vperm.xlu0 %538, %v509
      %v540 = vpop.permute.xlu0 %539
      %543 = vset.pattern.permute.xlu0 0
      %544 = vperm.xlu0 %543, %v510
      %v545 = vpop.permute.xlu0 %544
      %548 = vset.pattern.permute.xlu0 0
      %549 = vperm.xlu0 %548, %v511
      %v550 = vpop.permute.xlu0 %549
      %553 = vset.pattern.permute.xlu0 0
      %554 = vperm.xlu0 %553, %v512
      %v555 = vpop.permute.xlu0 %554
      %v557 = vmul.f32 %v457, %v540
      %v558 = vmul.f32 %v458, %v545
      %v559 = vmul.f32 %v459, %v550
      %v560 = vmul.f32 %v460, %v555
      %562 = vset.pattern.permute.xlu0 1
      %563 = vperm.xlu0 %562, %v533
      %v564 = vpop.permute.xlu0 %563
      %567 = vset.pattern.permute.xlu0 1
      %568 = vperm.xlu0 %567, %v534
      %v569 = vpop.permute.xlu0 %568
      %572 = vset.pattern.permute.xlu0 1
      %573 = vperm.xlu0 %572, %v535
      %v574 = vpop.permute.xlu0 %573
      %577 = vset.pattern.permute.xlu0 1
      %578 = vperm.xlu0 %577, %v536
      %v579 = vpop.permute.xlu0 %578
      %v581 = vadd.f32 %v557, %v564
      %v582 = vadd.f32 %v558, %v569
      %v583 = vadd.f32 %v559, %v574
      %v584 = vadd.f32 %v560, %v579
      %v585 = vmul.f32 %v581, 0.1
      %v586 = vmul.f32 %v582, 0.1
      %v587 = vmul.f32 %v583, 0.1
      %v588 = vmul.f32 %v584, 0.1
      %v589 = vmax.f32 %v581, %v585
      %v590 = vmax.f32 %v582, %v586
      %v591 = vmax.f32 %v583, %v587
      %v592 = vmax.f32 %v584, %v588
      %593 = vst [vmem:[%s229] sm:$0xff] %v591
      %594 = vst [vmem:[%s229 + $0x8] sm:$0xff] %v592
      %s595 = scalar_lea.vmem %s222, 16
      %v596 = vld [vmem:[%s595] sm:$0xff]
      %v597 = vld [vmem:[%s595 + $0x8] sm:$0xff]
      %598 = vmatprep.subr.mxu0 0.0
      %599 = vmatpush1.msra.mxu0 0.0
      %600 = vmatprep.subr.mxu0 0.0
      %601 = vmatpush1.msra.mxu0 0.0
      %602 = vmatprep.subr.mxu0 0.0
      %603 = vmatpush1.msra.mxu0 0.0
      %604 = vmatprep.subr.mxu0 0.0
      %605 = vmatpush1.msra.mxu0 0.0
      %606 = vmatprep.subr.mxu0 0.0
      %607 = vmatpush1.msra.mxu0 0.0
      %608 = vmatprep.subr.mxu0 0.0
      %609 = vmatpush1.msra.mxu0 0.0
      %610 = vmatprep.subr.mxu0 0.0
      %611 = vmatpush1.msra.mxu0 0.0
      %612 = vmatprep.subr.mxu0 0.0
      %613 = vmatpush1.msra.mxu0 0.0
      %614 = vmatprep.subr.mxu0 0.0
      %615 = vmatpush1.msra.mxu0 0.0
      %616 = vmatprep.subr.mxu0 0.0
      %617 = vmatpush1.msra.mxu0 0.0
      %618 = vmatprep.subr.mxu0 0.0
      %619 = vmatpush1.msra.mxu0 0.0
      %620 = vmatprep.subr.mxu0 0.0
      %621 = vmatpush1.msra.mxu0 0.0
      %622 = vmatprep.subr.mxu0 0.0
      %623 = vmatpush1.msra.mxu0 %v597
      %624 = vmatprep.subr.mxu0 0.0
      %625 = vmatpush1.msra.mxu0 %v596
      %626 = vmatprep.subr.mxu0 0.0
      %627 = vmatpush1.msra.mxu0 %v590
      %628 = vmatprep.subr.mxu0 0.0
      %629 = vmatpush1.msra.mxu0 %v589
      %630 = vmatprep.subr.mxu0 0.0
      %631 = vmatpush2.msra.mxu0 0.0
      %632 = vmatprep.subr.mxu0 0.0
      %633 = vmatpush2.msra.mxu0 0.0
      %634 = vmatprep.subr.mxu0 0.0
      %635 = vmatpush2.msra.mxu0 0.0
      %636 = vmatprep.subr.mxu0 0.0
      %637 = vmatpush2.msra.mxu0 0.0
      %638 = vmatprep.subr.mxu0 0.0
      %639 = vmatpush2.msra.mxu0 0.0
      %640 = vmatprep.subr.mxu0 0.0
      %641 = vmatpush2.msra.mxu0 0.0
      %642 = vmatprep.subr.mxu0 0.0
      %643 = vmatpush2.msra.mxu0 0.0
      %644 = vmatprep.subr.mxu0 0.0
      %645 = vmatpush2.msra.mxu0 0.0
      %646 = vmatprep.subr.mxu0 0.0
      %647 = vmatpush2.msra.mxu0 0.0
      %648 = vmatprep.subr.mxu0 0.0
      %649 = vmatpush2.msra.mxu0 0.0
      %650 = vmatprep.subr.mxu0 0.0
      %651 = vmatpush2.msra.mxu0 0.0
      %652 = vmatprep.subr.mxu0 0.0
      %653 = vmatpush2.msra.mxu0 0.0
      %654 = vmatprep.subr.mxu0 0.0
      %655 = vmatpush2.msra.mxu0 0.0
      %656 = vmatprep.subr.mxu0 0.0
      %657 = vmatpush2.msra.mxu0 0.0
      %658 = vmatprep.subr.mxu0 0.0
      %659 = vmatpush2.msra.mxu0 0.0
      %660 = vmatprep.subr.mxu0 0.0
      %661 = vmatpush2.msra.mxu0 0.0
      %662 = vmatprep.mubr.f32.mxu0 0.0
      %663 = vmatmul.mubr.f32.gmra.mxu0 %v261
      %v664 = vpop.f32.mrf.mxu0
      %v665 = vadd.f32 0.0, %v664
      %v666 = vpop.f32.mrf.mxu0
      %667 = vmatprep.mubr.f32.mxu0 0.0
      %668 = vmatmul.mubr.f32.gmra.mxu0 %v264
      %v669 = vpop.f32.mrf.mxu0
      %v670 = vadd.f32 0.0, %v669
      %v671 = vpop.f32.mrf.mxu0
      %672 = vmatprep.mubr.f32.mxu0 0.0
      %673 = vmatmul.mubr.f32.gmra.mxu0 %v267
      %v674 = vpop.f32.mrf.mxu0
      %v675 = vadd.f32 0.0, %v674
      %v676 = vpop.f32.mrf.mxu0
      %677 = vmatprep.mubr.f32.mxu0 0.0
      %678 = vmatmul.mubr.f32.gmra.mxu0 %v270
      %v679 = vpop.f32.mrf.mxu0
      %v680 = vadd.f32 0.0, %v679
      %v681 = vpop.f32.mrf.mxu0
      %682 = vmatprep.mubr.f32.mxu0 0.0
      %683 = vmatmul.mubr.f32.gmra.mxu0 %v273
      %v684 = vpop.f32.mrf.mxu0
      %v685 = vadd.f32 0.0, %v684
      %v686 = vpop.f32.mrf.mxu0
      %687 = vmatprep.mubr.f32.mxu0 0.0
      %688 = vmatmul.mubr.f32.gmra.mxu0 %v276
      %v689 = vpop.f32.mrf.mxu0
      %v690 = vadd.f32 0.0, %v689
      %v691 = vpop.f32.mrf.mxu0
      %692 = vmatprep.mubr.f32.mxu0 0.0
      %693 = vmatmul.mubr.f32.gmra.mxu0 %v279
      %v694 = vpop.f32.mrf.mxu0
      %v695 = vadd.f32 0.0, %v694
      %v696 = vpop.f32.mrf.mxu0
      %697 = vmatprep.mubr.f32.mxu0 0.0
      %698 = vmatmul.mubr.f32.gmra.mxu0 %v282
      %v699 = vpop.f32.mrf.mxu0
      %v700 = vadd.f32 0.0, %v699
      %v701 = vpop.f32.mrf.mxu0
      %702 = vmatprep.mubr.f32.mxu0 0.0
      %703 = vmatmul.mubr.f32.gmra.mxu0 %v285
      %v704 = vpop.f32.mrf.mxu0
      %v705 = vadd.f32 0.0, %v704
      %v706 = vpop.f32.mrf.mxu0
      %707 = vmatprep.mubr.f32.mxu0 0.0
      %708 = vmatmul.mubr.f32.gmra.mxu0 %v288
      %v709 = vpop.f32.mrf.mxu0
      %v710 = vadd.f32 0.0, %v709
      %v711 = vpop.f32.mrf.mxu0
      %712 = vmatprep.mubr.f32.mxu0 0.0
      %713 = vmatmul.mubr.f32.gmra.mxu0 %v291
      %v714 = vpop.f32.mrf.mxu0
      %v715 = vadd.f32 0.0, %v714
      %v716 = vpop.f32.mrf.mxu0
      %717 = vmatprep.mubr.f32.mxu0 0.0
      %718 = vmatmul.mubr.f32.gmra.mxu0 %v294
      %v719 = vpop.f32.mrf.mxu0
      %v720 = vadd.f32 0.0, %v719
      %v721 = vpop.f32.mrf.mxu0
      %722 = vdwg.mxu0
      %723 = vrot.lane.b32.xlu0 %v665, 1
      %v724 = vpop.permute.xlu0 %723
      %725 = vrot.lane.b32.xlu0 %v670, 1
      %v726 = vpop.permute.xlu0 %725
      %727 = vrot.lane.b32.xlu0 %v675, 1
      %v728 = vpop.permute.xlu0 %727
      %729 = vrot.lane.b32.xlu0 %v680, 1
      %v730 = vpop.permute.xlu0 %729
      %v731 = vmul.f32 %v724, %v432
      %v732 = vmul.f32 %v726, %v432
      %v733 = vmul.f32 %v728, %v432
      %v734 = vmul.f32 %v730, %v432
      %v735 = vadd.f32 %v685, %v731
      %v736 = vadd.f32 %v690, %v732
      %v737 = vadd.f32 %v695, %v733
      %v738 = vadd.f32 %v700, %v734
      %739 = vrot.lane.b32.xlu0 %v705, 127
      %v740 = vpop.permute.xlu0 %739
      %741 = vrot.lane.b32.xlu0 %v710, 127
      %v742 = vpop.permute.xlu0 %741
      %743 = vrot.lane.b32.xlu0 %v715, 127
      %v744 = vpop.permute.xlu0 %743
      %745 = vrot.lane.b32.xlu0 %v720, 127
      %v746 = vpop.permute.xlu0 %745
      %v747 = vmul.f32 %v740, %v452
      %v748 = vmul.f32 %v742, %v452
      %v749 = vmul.f32 %v744, %v452
      %v750 = vmul.f32 %v746, %v452
      %v751 = vadd.f32 %v735, %v747
      %v752 = vadd.f32 %v736, %v748
      %v753 = vadd.f32 %v737, %v749
      %v754 = vadd.f32 %v738, %v750
      %755 = vadd.xlane.f32.xlu0 %v751
      %v756 = vpop.xlane.xlu0 %755
      %757 = vadd.xlane.f32.xlu0 %v752
      %v758 = vpop.xlane.xlu0 %757
      %759 = vadd.xlane.f32.xlu0 %v753
      %v760 = vpop.xlane.xlu0 %759
      %761 = vadd.xlane.f32.xlu0 %v754
      %v762 = vpop.xlane.xlu0 %761
      %v763 = vmul.f32 %v751, %v751
      %v764 = vmul.f32 %v752, %v752
      %v765 = vmul.f32 %v753, %v753
      %v766 = vmul.f32 %v754, %v754
      %767 = vadd.xlane.f32.xlu0 %v763
      %v768 = vpop.xlane.xlu0 %767
      %769 = vadd.xlane.f32.xlu0 %v764
      %v770 = vpop.xlane.xlu0 %769
      %771 = vadd.xlane.f32.xlu0 %v765
      %v772 = vpop.xlane.xlu0 %771
      %773 = vadd.xlane.f32.xlu0 %v766
      %v774 = vpop.xlane.xlu0 %773
      %v775 = vmul.f32 %v756, 0.0078125
      %v776 = vmul.f32 %v758, 0.0078125
      %v777 = vmul.f32 %v760, 0.0078125
      %v778 = vmul.f32 %v762, 0.0078125
      %v779 = vmul.f32 %v768, 0.0078125
      %v780 = vmul.f32 %v770, 0.0078125
      %v781 = vmul.f32 %v772, 0.0078125
      %v782 = vmul.f32 %v774, 0.0078125
      %v783 = vmul.f32 %v775, %v775
      %v784 = vmul.f32 %v776, %v776
      %v785 = vmul.f32 %v777, %v777
      %v786 = vmul.f32 %v778, %v778
      %v787 = vsub.f32 %v779, %v783
      %v788 = vsub.f32 %v780, %v784
      %v789 = vsub.f32 %v781, %v785
      %v790 = vsub.f32 %v782, %v786
      %v791 = vmax.f32 %v787, 0.0
      %v792 = vmax.f32 %v788, 0.0
      %v793 = vmax.f32 %v789, 0.0
      %v794 = vmax.f32 %v790, 0.0
      %v795 = vadd.f32 %v791, 1e-05
      %v796 = vadd.f32 %v792, 1e-05
      %v797 = vadd.f32 %v793, 1e-05
      %v798 = vadd.f32 %v794, 1e-05
      %v799 = vrsqrt.pop %v795
      %v800 = vrsqrt.pop %v796
      %v801 = vrsqrt.pop %v797
      %v802 = vrsqrt.pop %v798
      %v803 = vmul.f32 %v249, %v799
      %v804 = vmul.f32 %v250, %v800
      %v805 = vmul.f32 %v251, %v801
      %v806 = vmul.f32 %v252, %v802
      %v807 = vmul.f32 %v775, %v803
      %v808 = vmul.f32 %v776, %v804
      %v809 = vmul.f32 %v777, %v805
      %v810 = vmul.f32 %v778, %v806
      %815 = vrot.lane.b32.xlu0 %v807, 1
      %v816 = vpop.permute.xlu0 %815
      %817 = vrot.lane.b32.xlu0 %v808, 1
      %v818 = vpop.permute.xlu0 %817
      %819 = vrot.lane.b32.xlu0 %v809, 1
      %v820 = vpop.permute.xlu0 %819
      %821 = vrot.lane.b32.xlu0 %v810, 1
      %v822 = vpop.permute.xlu0 %821
      %v827 = vsub.f32 %v249, %v816
      %v828 = vsub.f32 %v250, %v818
      %v829 = vsub.f32 %v251, %v820
      %v830 = vsub.f32 %v252, %v822
      %832 = vset.pattern.permute.xlu0 0
      %833 = vperm.xlu0 %832, %v803
      %v834 = vpop.permute.xlu0 %833
      %837 = vset.pattern.permute.xlu0 0
      %838 = vperm.xlu0 %837, %v804
      %v839 = vpop.permute.xlu0 %838
      %842 = vset.pattern.permute.xlu0 0
      %843 = vperm.xlu0 %842, %v805
      %v844 = vpop.permute.xlu0 %843
      %847 = vset.pattern.permute.xlu0 0
      %848 = vperm.xlu0 %847, %v806
      %v849 = vpop.permute.xlu0 %848
      %v851 = vmul.f32 %v751, %v834
      %v852 = vmul.f32 %v752, %v839
      %v853 = vmul.f32 %v753, %v844
      %v854 = vmul.f32 %v754, %v849
      %856 = vset.pattern.permute.xlu0 1
      %857 = vperm.xlu0 %856, %v827
      %v858 = vpop.permute.xlu0 %857
      %861 = vset.pattern.permute.xlu0 1
      %862 = vperm.xlu0 %861, %v828
      %v863 = vpop.permute.xlu0 %862
      %866 = vset.pattern.permute.xlu0 1
      %867 = vperm.xlu0 %866, %v829
      %v868 = vpop.permute.xlu0 %867
      %871 = vset.pattern.permute.xlu0 1
      %872 = vperm.xlu0 %871, %v830
      %v873 = vpop.permute.xlu0 %872
      %v875 = vadd.f32 %v851, %v858
      %v876 = vadd.f32 %v852, %v863
      %v877 = vadd.f32 %v853, %v868
      %v878 = vadd.f32 %v854, %v873
      %v879 = vmul.f32 %v875, 0.1
      %v880 = vmul.f32 %v876, 0.1
      %v881 = vmul.f32 %v877, 0.1
      %v882 = vmul.f32 %v878, 0.1
      %v883 = vmax.f32 %v875, %v879
      %v884 = vmax.f32 %v876, %v880
      %v885 = vmax.f32 %v877, %v881
      %v886 = vmax.f32 %v878, %v882
      %s887 = scalar_lea.vmem %s229, 16
      %888 = vst [vmem:[%s887] sm:$0xff] %v885
      %889 = vst [vmem:[%s887 + $0x8] sm:$0xff] %v886
      %890 = vst [vmem:[%s5] sm:$0xff] %v883
      %891 = vst [vmem:[%s5 + $0x8] sm:$0xff] %v884
      %s892 = smul.u32 2, %s17
      %p893 = scmp.lt.s32.totalorder %s892, 3
      %s894 = scalar_select %p893, %s892, 3
      %s895 = smul.addr %s894, 2
      %s896 = smul.addr %s895, 8
      %s897 = scalar_lea.vmem %s4, %s896
      // Predicated region
      $region41: #{rnn_forward_pallas.1} parent=35 // pred_check
        %p898 = pneg %p124
      $region42: #{rnn_forward_pallas.1} parent=35 // pred_check_branch
        %900 = sbr.rel (%p898) target = $region44
      $region43: #{rnn_forward_pallas.1} parent=35 // pred_region
        %s901 = smul.u32 2, %s17
      $region44: #{rnn_forward_pallas.1} parent=35 // pred_fallthru
        _
      // Predicated region
      $region45: #{rnn_forward_pallas.1} parent=35 // pred_check
        %p902 = pneg %p145
      $region46: #{rnn_forward_pallas.1} parent=35 // pred_check_branch
        %904 = sbr.rel (%p902) target = $region48
      $region47: #{rnn_forward_pallas.1} parent=35 // pred_region
        _
      $region48: #{rnn_forward_pallas.1} parent=35 // pred_fallthru
        _
      // Predicated region
      $region49: #{rnn_forward_pallas.1} parent=35 // pred_check
        %p905 = pneg %p145
      $region50: #{rnn_forward_pallas.1} parent=35 // pred_check_branch
        %907 = sbr.rel (%p905) target = $region52
      $region51: #{rnn_forward_pallas.1} parent=35 // pred_region
        _
      $region52: #{rnn_forward_pallas.1} parent=35 // pred_fallthru
        _
    $region36: #{rnn_forward_pallas.1} parent=5 // pred_fallthru
      _
    %p908 = scmp.le.s32.totalorder 2, %s12
    // Predicated region
    $region53: #{rnn_forward_pallas.1} parent=5 // pred_check
      %p909 = pneg %p908
    $region54: #{rnn_forward_pallas.1} parent=5 // pred_check_branch
      %911 = sbr.rel (%p909) target = $region56
    $region55: #{rnn_forward_pallas.1} parent=5 // pred_region
      %s912 = ssub.s32 %s12, 2
      // Predicated region
      $region57: #{rnn_forward_pallas.1} parent=55 // pred_check
        %p913 = pneg %p130
      $region58: #{rnn_forward_pallas.1} parent=55 // pred_check_branch
        %915 = sbr.rel (%p913) target = $region60
      $region59: #{rnn_forward_pallas.1} parent=55 // pred_region
        %s916 = smul.u32 2, %s18
        %p917 = scmp.lt.s32.totalorder %s916, 3
        %s918 = scalar_select %p917, %s916, 3
        %s919 = smul.addr %s918, 2
        %s920 = smul.addr %s919, 8
        %s921 = scalar_lea.vmem %s4, %s920
      $region60: #{rnn_forward_pallas.1} parent=55 // pred_fallthru
        _
    $region56: #{rnn_forward_pallas.1} parent=5 // pred_fallthru
      _
  $region6: #{rnn_forward_pallas.1} parent=0 // loop_footer
    %s16 = sadd.s32 1, %s12
  $region7: #{rnn_forward_pallas.1} parent=0 // loop_footer_branch
    %11 = sbr.rel target = $region3
  $region8: #{rnn_forward_pallas.1} parent=0 // loop_exit
    _

</llo_original>
